<compile_context>
chip_gen: v6e
topology: v6e:2x2x1
jax: 0.10.0
libtpu: 0.0.40
codegen_flags: <defaults>
</compile_context>

<pallas_src>
import jax
import jax.numpy as jnp
from jax.experimental import pallas as pl
from jax.experimental.pallas import tpu as pltpu


IN_DIM = 96
HIDDEN_DIM = 32
OUT_DIM = 1
NUM_LAYERS = 3
BN_EPS = 1e-5


def _round_up(n, m):
    return ((n + m - 1) // m) * m


def _decoder_kernel(x_ref, w1_ref, b1_ref, w2_ref, b2_ref, w3_ref, b3_ref, o_ref):
    # In-kernel bf16 cast of the streamed x tile (hidden under the DMA).
    x = x_ref[...].astype(jnp.bfloat16)

    # Layer 1: Linear(96 -> 32) with BN folded in, then ReLU.
    h = jnp.dot(x, w1_ref[...], preferred_element_type=jnp.float32)
    h = jnp.maximum(h + b1_ref[...], 0.0)

    # Layer 2: Linear(32 -> 32) with BN folded in, then ReLU.
    h = jnp.dot(h.astype(jnp.bfloat16), w2_ref[...],
                preferred_element_type=jnp.float32)
    h = jnp.maximum(h + b2_ref[...], 0.0)

    # Layer 3: Linear(32 -> 1) with BN folded in -- VPU multiply + lane
    # reduction (keeps the MXU for the real matmuls).
    z = jnp.sum(h * w3_ref[...], axis=-1, keepdims=True) + b3_ref[...]

    # Sigmoid via the tanh identity: one EUP transcendental, exact [0, 1].
    o_ref[...] = 0.5 * jnp.tanh(0.5 * z) + 0.5


def _fold_bn_into_linear(w, b, gamma, beta, mean, var, eps=BN_EPS):
    """Fold eval-mode BatchNorm1d into the preceding Linear layer."""
    scale = gamma / jnp.sqrt(var + eps)          # (out,)
    shift = beta - mean * scale                  # (out,)
    w_folded = w * scale[None, :]                # (in, out)
    b_folded = b * scale + shift                 # (out,)
    return w_folded.astype(jnp.float32), b_folded.astype(jnp.float32)


def _choose_tile(B, tile_b, min_tiles=4):
    """Largest tile <= tile_b, keeping >= min_tiles grid steps when possible."""
    t = min(tile_b, _round_up(pl.cdiv(B, min_tiles), 16))
    return max(t, 16)


def decoder_forward(x, params, tile_b=8192):
    """x: (B, IN_DIM) float32.  params: dict of Linear/BN parameters."""
    B = x.shape[0]

    # Host-side constant folding of BN into the Linear layers.
    w1, b1 = _fold_bn_into_linear(params["w1"], params["b1"],
                                  params["bn1_gamma"], params["bn1_beta"],
                                  params["bn1_mean"], params["bn1_var"])
    w2, b2 = _fold_bn_into_linear(params["w2"], params["b2"],
                                  params["bn2_gamma"], params["bn2_beta"],
                                  params["bn2_mean"], params["bn2_var"])
    w3, b3 = _fold_bn_into_linear(params["w3"], params["b3"],
                                  params["bn3_gamma"], params["bn3_beta"],
                                  params["bn3_mean"], params["bn3_var"])

    TILE_B = _choose_tile(B, tile_b)
    grid = (pl.cdiv(B, TILE_B),)        # ragged last block masked by Pallas

    # Tiny MXU weights in bf16 (f32 accumulation in-kernel); bias/row vectors
    # in f32, shaped (1, F) so they broadcast over the batch (sublane) axis.
    w1_bf16 = w1.astype(jnp.bfloat16)
    w2_bf16 = w2.astype(jnp.bfloat16)
    b1_row = b1.reshape(1, HIDDEN_DIM)
    b2_row = b2.reshape(1, HIDDEN_DIM)
    w3_row = w3.reshape(1, HIDDEN_DIM)          # (32, 1) -> (1, 32)
    b3_row = b3.reshape(1, OUT_DIM)

    # x / out are tiled over the batch axis; weights always index block
    # (0, 0) -> VMEM-resident across the whole grid.
    x_spec = pl.BlockSpec((TILE_B, IN_DIM), lambda i: (i, 0))
    out_spec = pl.BlockSpec((TILE_B, OUT_DIM), lambda i: (i, 0))

    def resident(shape):
        return pl.BlockSpec(shape, lambda i: (0, 0))

    out = pl.pallas_call(
        _decoder_kernel,
        out_shape=jax.ShapeDtypeStruct((B, OUT_DIM), jnp.float32),
        grid=grid,
        in_specs=[
            x_spec,
            resident((IN_DIM, HIDDEN_DIM)), resident((1, HIDDEN_DIM)),
            resident((HIDDEN_DIM, HIDDEN_DIM)), resident((1, HIDDEN_DIM)),
            resident((1, HIDDEN_DIM)), resident((1, OUT_DIM)),
        ],
        out_specs=out_spec,
        compiler_params=pltpu.CompilerParams(
            dimension_semantics=("parallel",)),
    )(x, w1_bf16, b1_row, w2_bf16, b2_row, w3_row, b3_row)

    return out


def init_params(key):
    """Deterministic parameter init matching the module's shapes."""
    ks = jax.random.split(key, 6)

    def linear(kw, kb, fan_in, fan_out):
        # PyTorch nn.Linear default: U(-1/sqrt(fan_in), 1/sqrt(fan_in)).
        bound = 1.0 / jnp.sqrt(fan_in)
        w = jax.random.uniform(kw, (fan_in, fan_out), jnp.float32, -bound, bound)
        b = jax.random.uniform(kb, (fan_out,), jnp.float32, -bound, bound)
        return w, b

    w1, b1 = linear(ks[0], ks[1], IN_DIM, HIDDEN_DIM)
    w2, b2 = linear(ks[2], ks[3], HIDDEN_DIM, HIDDEN_DIM)
    w3, b3 = linear(ks[4], ks[5], HIDDEN_DIM, OUT_DIM)

    def bn(dim):
        return dict(gamma=jnp.ones((dim,), jnp.float32),
                    beta=jnp.zeros((dim,), jnp.float32),
                    mean=jnp.zeros((dim,), jnp.float32),
                    var=jnp.ones((dim,), jnp.float32))

    bn1, bn2, bn3 = bn(HIDDEN_DIM), bn(HIDDEN_DIM), bn(OUT_DIM)

    return dict(
        w1=w1, b1=b1,
        bn1_gamma=bn1["gamma"], bn1_beta=bn1["beta"],
        bn1_mean=bn1["mean"], bn1_var=bn1["var"],
        w2=w2, b2=b2,
        bn2_gamma=bn2["gamma"], bn2_beta=bn2["beta"],
        bn2_mean=bn2["mean"], bn2_var=bn2["var"],
        w3=w3, b3=b3,
        bn3_gamma=bn3["gamma"], bn3_beta=bn3["beta"],
        bn3_mean=bn3["mean"], bn3_var=bn3["var"],
    )


def decoder_reference(x, params):
    """Pure-JAX f32 reference for correctness check (eval-mode BN)."""
    def bn(h, g, b, m, v):
        return (h - m) / jnp.sqrt(v + BN_EPS) * g + b

    h = x @ params["w1"] + params["b1"]
    h = jnp.maximum(bn(h, params["bn1_gamma"], params["bn1_beta"],
                       params["bn1_mean"], params["bn1_var"]), 0.0)
    h = h @ params["w2"] + params["b2"]
    h = jnp.maximum(bn(h, params["bn2_gamma"], params["bn2_beta"],
                       params["bn2_mean"], params["bn2_var"]), 0.0)
    h = h @ params["w3"] + params["b3"]
    h = bn(h, params["bn3_gamma"], params["bn3_beta"],
           params["bn3_mean"], params["bn3_var"])
    return jax.nn.sigmoid(h)


if __name__ == "__main__":
    key = jax.random.PRNGKey(0)
    k_param, k_x1, k_x2 = jax.random.split(key, 3)

    params = init_params(k_param)

    # Small batch of pooled graph embeddings (single grid step, ragged block).
    B = 8
    x = jax.random.normal(k_x1, (B, IN_DIM), jnp.float32)
    out = jax.block_until_ready(decoder_forward(x, params))
    ref = decoder_reference(x, params)
    assert out.shape == (B, OUT_DIM)
    # bf16 MXU inputs with f32 accumulation -> loosened tolerance vs f32 ref.
    assert jnp.allclose(out, ref, atol=2e-2, rtol=2e-2), (out, ref)
    assert bool(jnp.all(out >= 0.0)) and bool(jnp.all(out <= 1.0))

    # Exercise the multi-step batch-tiled grid with a ragged last tile
    # (40 rows, TILE_B=16 -> 3 grid steps, last block partial).
    B2 = 40
    x2 = jax.random.normal(k_x2, (B2, IN_DIM), jnp.float32)
    out2 = jax.block_until_ready(decoder_forward(x2, params, tile_b=16))
    ref2 = decoder_reference(x2, params)
    assert out2.shape == (B2, OUT_DIM)
    assert jnp.allclose(out2, ref2, atol=2e-2, rtol=2e-2), (out2, ref2)

    print("KERNEL_OK")
</pallas_src>

<mosaic_0001>
module attributes {stable_mosaic.version = 11 : i64} {
  func.func @_decoder_kernel(%arg0: i32, %arg1: memref<16x96xf32, #tpu.memory_space<vmem>>, %arg2: memref<96x32xbf16, #tpu.memory_space<vmem>>, %arg3: memref<1x32xf32, #tpu.memory_space<vmem>>, %arg4: memref<32x32xbf16, #tpu.memory_space<vmem>>, %arg5: memref<1x32xf32, #tpu.memory_space<vmem>>, %arg6: memref<1x32xf32, #tpu.memory_space<vmem>>, %arg7: memref<1x1xf32, #tpu.memory_space<vmem>>, %arg8: memref<16x1xf32, #tpu.memory_space<vmem>>) attributes {dimension_semantics = [#tpu.dimension_semantics<parallel>], iteration_bounds = array<i64: 1>, scalar_prefetch = 0 : i64, scratch_operands = 0 : i64, tpu.core_type = #tpu.core_type<tc>, window_params = [{transform_indices = @transform_0, window_bounds = array<i64: 16, 96>}, {pipeline_mode = #tpu.pipeline_mode<synchronous>, transform_indices = @transform_1, window_bounds = array<i64: 96, 32>}, {pipeline_mode = #tpu.pipeline_mode<synchronous>, transform_indices = @transform_2, window_bounds = array<i64: 1, 32>}, {pipeline_mode = #tpu.pipeline_mode<synchronous>, transform_indices = @transform_3, window_bounds = array<i64: 32, 32>}, {pipeline_mode = #tpu.pipeline_mode<synchronous>, transform_indices = @transform_4, window_bounds = array<i64: 1, 32>}, {pipeline_mode = #tpu.pipeline_mode<synchronous>, transform_indices = @transform_5, window_bounds = array<i64: 1, 32>}, {pipeline_mode = #tpu.pipeline_mode<synchronous>, transform_indices = @transform_6, window_bounds = array<i64: 1, 1>}, {transform_indices = @transform_7, window_bounds = array<i64: 16, 1>}]} {
    %c0 = arith.constant 0 : index
    %c0_0 = arith.constant 0 : index
    %0 = vector.load %arg1[%c0, %c0_0] : memref<16x96xf32, #tpu.memory_space<vmem>>, vector<16x96xf32>
    %1 = arith.truncf %0 : vector<16x96xf32> to vector<16x96xbf16>
    %c0_1 = arith.constant 0 : index
    %c0_2 = arith.constant 0 : index
    %2 = vector.load %arg2[%c0_1, %c0_2] : memref<96x32xbf16, #tpu.memory_space<vmem>>, vector<96x32xbf16>
    %cst = arith.constant dense<0.000000e+00> : vector<16x32xf32>
    %3 = tpu.matmul %1, %2, %cst {dimension_numbers = #tpu.dot_dimension_numbers<[1], [0], [0], [1], [0, 0, 1, 1], [], []>} : vector<16x96xbf16>, vector<96x32xbf16>, vector<16x32xf32> -> vector<16x32xf32>
    %c0_3 = arith.constant 0 : index
    %c0_4 = arith.constant 0 : index
    %4 = vector.load %arg3[%c0_3, %c0_4] : memref<1x32xf32, #tpu.memory_space<vmem>>, vector<1x32xf32>
    %5 = vector.broadcast %4 : vector<1x32xf32> to vector<16x32xf32>
    %6 = arith.addf %3, %5 : vector<16x32xf32>
    %cst_5 = arith.constant 0.000000e+00 : f32
    %7 = vector.broadcast %cst_5 : f32 to vector<16x32xf32>
    %8 = arith.maximumf %6, %7 : vector<16x32xf32>
    %9 = arith.truncf %8 : vector<16x32xf32> to vector<16x32xbf16>
    %c0_6 = arith.constant 0 : index
    %c0_7 = arith.constant 0 : index
    %10 = vector.load %arg4[%c0_6, %c0_7] : memref<32x32xbf16, #tpu.memory_space<vmem>>, vector<32x32xbf16>
    %cst_8 = arith.constant dense<0.000000e+00> : vector<16x32xf32>
    %11 = tpu.matmul %9, %10, %cst_8 {dimension_numbers = #tpu.dot_dimension_numbers<[1], [0], [0], [1], [0, 0, 1, 1], [], []>} : vector<16x32xbf16>, vector<32x32xbf16>, vector<16x32xf32> -> vector<16x32xf32>
    %c0_9 = arith.constant 0 : index
    %c0_10 = arith.constant 0 : index
    %12 = vector.load %arg5[%c0_9, %c0_10] : memref<1x32xf32, #tpu.memory_space<vmem>>, vector<1x32xf32>
    %13 = vector.broadcast %12 : vector<1x32xf32> to vector<16x32xf32>
    %14 = arith.addf %11, %13 : vector<16x32xf32>
    %cst_11 = arith.constant 0.000000e+00 : f32
    %15 = vector.broadcast %cst_11 : f32 to vector<16x32xf32>
    %16 = arith.maximumf %14, %15 : vector<16x32xf32>
    %c0_12 = arith.constant 0 : index
    %c0_13 = arith.constant 0 : index
    %17 = vector.load %arg6[%c0_12, %c0_13] : memref<1x32xf32, #tpu.memory_space<vmem>>, vector<1x32xf32>
    %18 = vector.broadcast %17 : vector<1x32xf32> to vector<16x32xf32>
    %19 = arith.mulf %16, %18 : vector<16x32xf32>
    %cst_14 = arith.constant dense<0.000000e+00> : vector<16xf32>
    %20 = vector.multi_reduction <add>, %19, %cst_14 [1] : vector<16x32xf32> to vector<16xf32>
    %21 = vector.shape_cast %20 : vector<16xf32> to vector<16x1xf32>
    %c0_15 = arith.constant 0 : index
    %c0_16 = arith.constant 0 : index
    %22 = vector.load %arg7[%c0_15, %c0_16] : memref<1x1xf32, #tpu.memory_space<vmem>>, vector<1x1xf32>
    %23 = vector.broadcast %22 : vector<1x1xf32> to vector<16x1xf32>
    %24 = arith.addf %21, %23 : vector<16x1xf32>
    %cst_17 = arith.constant 5.000000e-01 : f32
    %25 = vector.broadcast %cst_17 : f32 to vector<16x1xf32>
    %26 = arith.mulf %25, %24 : vector<16x1xf32>
    %27 = math.tanh %26 : vector<16x1xf32>
    %cst_18 = arith.constant 5.000000e-01 : f32
    %28 = vector.broadcast %cst_18 : f32 to vector<16x1xf32>
    %29 = arith.mulf %28, %27 : vector<16x1xf32>
    %cst_19 = arith.constant 5.000000e-01 : f32
    %30 = vector.broadcast %cst_19 : f32 to vector<16x1xf32>
    %31 = arith.addf %29, %30 : vector<16x1xf32>
    %c0_20 = arith.constant 0 : index
    %c0_21 = arith.constant 0 : index
    %32 = vector.load %arg8[%c0_20, %c0_21] : memref<16x1xf32, #tpu.memory_space<vmem>>, vector<16x1xf32>
    tpu.vector_store %arg8[%c0_20, %c0_21], %31 {strides = array<i32>} : memref<16x1xf32, #tpu.memory_space<vmem>>, vector<16x1xf32>,
    return
  }
  func.func @transform_0(%arg0: i32) -> (i32, i32) {
    %c0_i32 = arith.constant 0 : i32
    %c0_i32_0 = arith.constant 0 : i32
    return %arg0, %c0_i32 : i32, i32
  }
  func.func @transform_1(%arg0: i32) -> (i32, i32) {
    %c0_i32 = arith.constant 0 : i32
    %c0_i32_0 = arith.constant 0 : i32
    %c0_i32_1 = arith.constant 0 : i32
    return %c0_i32, %c0_i32_0 : i32, i32
  }
  func.func @transform_2(%arg0: i32) -> (i32, i32) {
    %c0_i32 = arith.constant 0 : i32
    %c0_i32_0 = arith.constant 0 : i32
    %c0_i32_1 = arith.constant 0 : i32
    return %c0_i32, %c0_i32_0 : i32, i32
  }
  func.func @transform_3(%arg0: i32) -> (i32, i32) {
    %c0_i32 = arith.constant 0 : i32
    %c0_i32_0 = arith.constant 0 : i32
    %c0_i32_1 = arith.constant 0 : i32
    return %c0_i32, %c0_i32_0 : i32, i32
  }
  func.func @transform_4(%arg0: i32) -> (i32, i32) {
    %c0_i32 = arith.constant 0 : i32
    %c0_i32_0 = arith.constant 0 : i32
    %c0_i32_1 = arith.constant 0 : i32
    return %c0_i32, %c0_i32_0 : i32, i32
  }
  func.func @transform_5(%arg0: i32) -> (i32, i32) {
    %c0_i32 = arith.constant 0 : i32
    %c0_i32_0 = arith.constant 0 : i32
    %c0_i32_1 = arith.constant 0 : i32
    return %c0_i32, %c0_i32_0 : i32, i32
  }
  func.func @transform_6(%arg0: i32) -> (i32, i32) {
    %c0_i32 = arith.constant 0 : i32
    %c0_i32_0 = arith.constant 0 : i32
    %c0_i32_1 = arith.constant 0 : i32
    return %c0_i32, %c0_i32_0 : i32, i32
  }
  func.func @transform_7(%arg0: i32) -> (i32, i32) {
    %c0_i32 = arith.constant 0 : i32
    %c0_i32_0 = arith.constant 0 : i32
    return %arg0, %c0_i32 : i32, i32
  }
}

</mosaic_0001>

<llo_original>
// kernel: tpu_custom_call.1
$region0: #{tpu_custom_call.1}
  #allocation0 [shape = 'u32[]', space=smem, size = 0x4, offset = 0x4, fixed_abs, tag = 'smem constant byte address 0x4 - core index']
  #allocation1 [shape = 'u32[144,128]{1,0:T(1,128)}', space=vmem, size = 0x12000, scoped, tag = 'internal scratch']
  #allocation2 [shape = 'f32[1,1]{1,0:T(1,128)S(1)}', space=vmem, size = 0x200, scoped, tag = 'scoped memory for tpu_custom_call.1']
  %s0 = inlined_call_operand.vmem [shape: f32[8,96], index: 0, kind: input, shape index: {}]
  %s1 = inlined_call_operand.vmem [shape: bf16[96,32], index: 1, kind: input, shape index: {}]
  %s2 = inlined_call_operand.vmem [shape: f32[1,32], index: 2, kind: input, shape index: {}]
  %s3 = inlined_call_operand.vmem [shape: bf16[32,32], index: 3, kind: input, shape index: {}]
  %s4 = inlined_call_operand.vmem [shape: f32[1,32], index: 4, kind: input, shape index: {}]
  %s5 = inlined_call_operand.vmem [shape: f32[1,32], index: 5, kind: input, shape index: {}]
  %s6 = inlined_call_operand.<no memory space> [shape: f32[1,1], index: 6, kind: input, shape index: {}]
  %s7 = inlined_call_operand.vmem [shape: f32[8,1], index: 7, kind: output, shape index: {}]
  %s8 = sld [smem:[#allocation0]]
  $region72: #{tpu_custom_call.1} parent=0
    _
  %s10 = ssub.s32 1, %s8
  %s11 = scalar_select 0, %s10, %s8
  %v12 = vstv %s6
  %13 = vst [vmem:[#allocation2] sm:$0x1] %v12
  $region1: #{tpu_custom_call.1} parent=0
    #allocation3 [shape = 'u8[8192]{0}', space=vmem, size = 0x2000, scoped, tag = 'output window, operand 0, single buffered']
    // Predicated region
    $region2: #{tpu_custom_call.1} parent=1 // pred_check
      _
    $region3: #{tpu_custom_call.1} parent=1 // pred_check_branch
      %15 = sbr.rel (0) target = $region5
    $region4: #{tpu_custom_call.1} parent=1 // pred_region
      _
    $region5: #{tpu_custom_call.1} parent=1 // pred_fallthru
      _
    // Predicated region
    $region6: #{tpu_custom_call.1} parent=1 // pred_check
      _
    $region7: #{tpu_custom_call.1} parent=1 // pred_check_branch
      %17 = sbr.rel (0) target = $region9
    $region8: #{tpu_custom_call.1} parent=1 // pred_region
      _
    $region9: #{tpu_custom_call.1} parent=1 // pred_fallthru
      _
    // Predicated region
    $region10: #{tpu_custom_call.1} parent=1 // pred_check
      _
    $region11: #{tpu_custom_call.1} parent=1 // pred_check_branch
      %19 = sbr.rel (0) target = $region13
    $region12: #{tpu_custom_call.1} parent=1 // pred_region
      _
    $region13: #{tpu_custom_call.1} parent=1 // pred_fallthru
      _
    // Predicated region
    $region14: #{tpu_custom_call.1} parent=1 // pred_check
      _
    $region15: #{tpu_custom_call.1} parent=1 // pred_check_branch
      %21 = sbr.rel (0) target = $region17
    $region16: #{tpu_custom_call.1} parent=1 // pred_region
      _
    $region17: #{tpu_custom_call.1} parent=1 // pred_fallthru
      _
    // Predicated region
    $region18: #{tpu_custom_call.1} parent=1 // pred_check
      _
    $region19: #{tpu_custom_call.1} parent=1 // pred_check_branch
      %23 = sbr.rel (0) target = $region21
    $region20: #{tpu_custom_call.1} parent=1 // pred_region
      _
    $region21: #{tpu_custom_call.1} parent=1 // pred_fallthru
      _
    // Predicated region
    $region22: #{tpu_custom_call.1} parent=1 // pred_check
      _
    $region23: #{tpu_custom_call.1} parent=1 // pred_check_branch
      %25 = sbr.rel (0) target = $region25
    $region24: #{tpu_custom_call.1} parent=1 // pred_region
      _
    $region25: #{tpu_custom_call.1} parent=1 // pred_fallthru
      _
    // Predicated region
    $region26: #{tpu_custom_call.1} parent=1 // pred_check
      _
    $region27: #{tpu_custom_call.1} parent=1 // pred_check_branch
      %27 = sbr.rel (0) target = $region29
    $region28: #{tpu_custom_call.1} parent=1 // pred_region
      _
    $region29: #{tpu_custom_call.1} parent=1 // pred_fallthru
      _
    %v29 = vld [vmem:[%s0] sm:$0xff]
    %v30 = vld [vmem:[%s0 + $0x8] sm:$0xff]
    %v31 = vpack.c.bf16 %v30, %v29
    %v32 = vld [vmem:[%s1] sm:$0xf]
    %v33 = vld [vmem:[%s1 + $0x4] sm:$0xf]
    %v34 = vld [vmem:[%s1 + $0x8] sm:$0xf]
    %v35 = vld [vmem:[%s1 + $0xc] sm:$0xf]
    %v36 = vld [vmem:[%s1 + $0x10] sm:$0xf]
    %v37 = vld [vmem:[%s1 + $0x14] sm:$0xf]
    %v38 = vld [vmem:[%s1 + $0x18] sm:$0xf]
    %v39 = vld [vmem:[%s1 + $0x1c] sm:$0xf]
    %v40 = vld [vmem:[%s1 + $0x20] sm:$0xf]
    %v41 = vld [vmem:[%s1 + $0x24] sm:$0xf]
    %v42 = vld [vmem:[%s1 + $0x28] sm:$0xf]
    %v43 = vld [vmem:[%s1 + $0x2c] sm:$0xf]
    %v44 = vld [vmem:[%s2] sm:$0x1]
    %v46 = vlaneseq
    %v47 = vshrl.u32 %v46, 7
    %v48 = vsub.s32 0, %v47
    %v49 = vrot.slane %v44, %v48
    %v63 = vunpack.c.l.b16 %v32
    %v64 = vunpack.c.l.b16 %v33
    %v65 = vunpack.c.l.b16 %v34
    %v66 = vunpack.c.l.b16 %v35
    %v67 = vunpack.c.l.b16 %v36
    %v68 = vunpack.c.l.b16 %v37
    %v69 = vunpack.c.l.b16 %v38
    %v70 = vunpack.c.l.b16 %v39
    %v71 = vunpack.c.l.b16 %v40
    %v72 = vunpack.c.l.b16 %v41
    %v73 = vunpack.c.l.b16 %v42
    %v74 = vunpack.c.l.b16 %v43
    %v75 = vpack.c.b16 %v64, %v63
    %v76 = vpack.c.b16 %v66, %v65
    %v77 = vpack.c.b16 %v68, %v67
    %v78 = vpack.c.b16 %v70, %v69
    %v79 = vpack.c.b16 %v72, %v71
    %v80 = vpack.c.b16 %v74, %v73
    %vm87 = vcmask 785408
    %v89 = vsel %vm87, %v31, 0
    %91 = vmatprep.subr.bf16.mxu0 0
    %92 = vmatpush1.bf16.msra.mxu0 0
    %93 = vmatprep.subr.bf16.mxu0 0
    %94 = vmatpush1.bf16.msra.mxu0 0
    %95 = vmatprep.subr.bf16.mxu0 0
    %96 = vmatpush1.bf16.msra.mxu0 %v80
    %97 = vmatprep.subr.bf16.mxu0 0
    %98 = vmatpush1.bf16.msra.mxu0 %v79
    %99 = vmatprep.subr.bf16.mxu0 0
    %100 = vmatpush1.bf16.msra.mxu0 %v78
    %101 = vmatprep.subr.bf16.mxu0 0
    %102 = vmatpush1.bf16.msra.mxu0 %v77
    %103 = vmatprep.subr.bf16.mxu0 0
    %104 = vmatpush1.bf16.msra.mxu0 %v76
    %105 = vmatprep.subr.bf16.mxu0 0
    %106 = vmatpush1.bf16.msra.mxu0 %v75
    %107 = vmatprep.subr.bf16.mxu0 0
    %108 = vmatpush2.bf16.msra.mxu0 0
    %109 = vmatprep.subr.bf16.mxu0 0
    %110 = vmatpush2.bf16.msra.mxu0 0
    %111 = vmatprep.subr.bf16.mxu0 0
    %112 = vmatpush2.bf16.msra.mxu0 0
    %113 = vmatprep.subr.bf16.mxu0 0
    %114 = vmatpush2.bf16.msra.mxu0 0
    %115 = vmatprep.subr.bf16.mxu0 0
    %116 = vmatpush2.bf16.msra.mxu0 0
    %117 = vmatprep.subr.bf16.mxu0 0
    %118 = vmatpush2.bf16.msra.mxu0 0
    %119 = vmatprep.subr.bf16.mxu0 0
    %120 = vmatpush2.bf16.msra.mxu0 0
    %121 = vmatprep.subr.bf16.mxu0 0
    %122 = vmatpush2.bf16.msra.mxu0 0
    %123 = vmatprep.mubr.bf16.mxu0 0
    %124 = vmatmul.mubr.bf16.gmra.mxu0 %v89
    %v125 = vpop.f32.mrf.mxu0
    %v126 = vadd.f32 %v49, %v125
    %v127 = vpop.f32.mrf.mxu0
    %v128 = vpop.f32.mrf.mxu0
    %v129 = vadd.f32 %v49, %v128
    %v130 = vpop.f32.mrf.mxu0
    %131 = vdwg.mxu0
    %v132 = vmax.f32 %v126, 0.0
    %v133 = vmax.f32 %v129, 0.0
    %v134 = vpack.c.bf16 %v133, %v132
    %v135 = vld [vmem:[%s3] sm:$0xf]
    %v136 = vld [vmem:[%s3 + $0x4] sm:$0xf]
    %v137 = vld [vmem:[%s3 + $0x8] sm:$0xf]
    %v138 = vld [vmem:[%s3 + $0xc] sm:$0xf]
    %v139 = vld [vmem:[%s4] sm:$0x1]
    %v141 = vlaneseq
    %v142 = vshrl.u32 %v141, 7
    %v143 = vsub.s32 0, %v142
    %v144 = vrot.slane %v139, %v143
    %v150 = vunpack.c.l.b16 %v135
    %v151 = vunpack.c.l.b16 %v136
    %v152 = vunpack.c.l.b16 %v137
    %v153 = vunpack.c.l.b16 %v138
    %v154 = vpack.c.b16 %v151, %v150
    %v155 = vpack.c.b16 %v153, %v152
    %vm158 = vcmask 261120
    %v160 = vsel %vm158, %v134, 0
    %162 = vmatprep.subr.bf16.mxu0 0
    %163 = vmatpush1.bf16.msra.mxu0 0
    %164 = vmatprep.subr.bf16.mxu0 0
    %165 = vmatpush1.bf16.msra.mxu0 0
    %166 = vmatprep.subr.bf16.mxu0 0
    %167 = vmatpush1.bf16.msra.mxu0 0
    %168 = vmatprep.subr.bf16.mxu0 0
    %169 = vmatpush1.bf16.msra.mxu0 0
    %170 = vmatprep.subr.bf16.mxu0 0
    %171 = vmatpush1.bf16.msra.mxu0 0
    %172 = vmatprep.subr.bf16.mxu0 0
    %173 = vmatpush1.bf16.msra.mxu0 0
    %174 = vmatprep.subr.bf16.mxu0 0
    %175 = vmatpush1.bf16.msra.mxu0 %v155
    %176 = vmatprep.subr.bf16.mxu0 0
    %177 = vmatpush1.bf16.msra.mxu0 %v154
    %178 = vmatprep.subr.bf16.mxu0 0
    %179 = vmatpush2.bf16.msra.mxu0 0
    %180 = vmatprep.subr.bf16.mxu0 0
    %181 = vmatpush2.bf16.msra.mxu0 0
    %182 = vmatprep.subr.bf16.mxu0 0
    %183 = vmatpush2.bf16.msra.mxu0 0
    %184 = vmatprep.subr.bf16.mxu0 0
    %185 = vmatpush2.bf16.msra.mxu0 0
    %186 = vmatprep.subr.bf16.mxu0 0
    %187 = vmatpush2.bf16.msra.mxu0 0
    %188 = vmatprep.subr.bf16.mxu0 0
    %189 = vmatpush2.bf16.msra.mxu0 0
    %190 = vmatprep.subr.bf16.mxu0 0
    %191 = vmatpush2.bf16.msra.mxu0 0
    %192 = vmatprep.subr.bf16.mxu0 0
    %193 = vmatpush2.bf16.msra.mxu0 0
    %194 = vmatprep.mubr.bf16.mxu0 0
    %195 = vmatmul.mubr.bf16.gmra.mxu0 %v160
    %v196 = vpop.f32.mrf.mxu0
    %v197 = vadd.f32 %v144, %v196
    %v198 = vpop.f32.mrf.mxu0
    %v199 = vpop.f32.mrf.mxu0
    %v200 = vadd.f32 %v144, %v199
    %v201 = vpop.f32.mrf.mxu0
    %202 = vdwg.mxu0
    %v203 = vmax.f32 %v197, 0.0
    %v204 = vmax.f32 %v200, 0.0
    %v205 = vld [vmem:[%s5] sm:$0x1]
    %v207 = vlaneseq
    %v208 = vshrl.u32 %v207, 7
    %v209 = vsub.s32 0, %v208
    %v210 = vrot.slane %v205, %v209
    %v212 = vmul.f32 %v203, %v210
    %v213 = vmul.f32 %v204, %v210
    %v214 = vsel %vm158, %v212, 0.0
    %215 = vadd.xlane.f32.xlu0 %v214
    %v216 = vpop.xlane.xlu0 %215
    %v217 = vsel %vm158, %v213, 0.0
    %218 = vadd.xlane.f32.xlu0 %v217
    %v219 = vpop.xlane.xlu0 %218
    %v220 = vld [vmem:[#allocation2] sm:$0x1]
    %v222 = vlaneseq
    %v223 = vshrl.u32 %v222, 7
    %v224 = vsub.s32 0, %v223
    %v225 = vrot.slane %v220, %v224
    %v227 = vadd.f32 %v216, %v225
    %v228 = vadd.f32 %v219, %v225
    %v229 = vmul.f32 %v227, 0.5
    %v230 = vmul.f32 %v228, 0.5
    %v231 = vtanh.pop %v229
    %v232 = vtanh.pop %v230
    %v233 = vmul.f32 %v231, 0.5
    %v234 = vmul.f32 %v232, 0.5
    %v235 = vadd.f32 %v233, 0.5
    %v236 = vadd.f32 %v234, 0.5
    %vm237 = vcmask 7168
    %238 = vst.msk [vmem:[#allocation3] sm:$0xff] %vm237, %v235
    %239 = vst.msk [vmem:[#allocation3 + $0x8] sm:$0xff] %vm237, %v236
    // Predicated region
    $region30: #{tpu_custom_call.1} parent=1 // pred_check
      _
    $region31: #{tpu_custom_call.1} parent=1 // pred_check_branch
      %241 = sbr.rel (0) target = $region33
    $region32: #{tpu_custom_call.1} parent=1 // pred_region
      // Predicated region
      $region34: #{tpu_custom_call.1} parent=32 // pred_check
        _
      $region35: #{tpu_custom_call.1} parent=32 // pred_check_branch
        %243 = sbr.rel (0) target = $region37
      $region36: #{tpu_custom_call.1} parent=32 // pred_region
        // Predicated region
        $region38: #{tpu_custom_call.1} parent=36 // pred_check
          _
        $region39: #{tpu_custom_call.1} parent=36 // pred_check_branch
          %245 = sbr.rel (0) target = $region41
        $region40: #{tpu_custom_call.1} parent=36 // pred_region
          // Predicated region
          $region53: #{tpu_custom_call.1} parent=40 // pred_check
            _
          $region54: #{tpu_custom_call.1} parent=40 // pred_check_branch
            %261 = sbr.rel (0) target = $region56
          $region55: #{tpu_custom_call.1} parent=40 // pred_region
            loop: start=0, step=1, limit=1
            $region57: #{tpu_custom_call.1} parent=55 // loop_pre_header
              _
            $region58: #{tpu_custom_call.1} parent=55 // loop_header
              %s263 = sphi 0, %s267
              %p264 = scmp.ge.s32.totalorder %s263, 1
              %s268 = sphi [#allocation3], [#allocation3]
              %s269 = sphi %s7, %s7
            $region59: #{tpu_custom_call.1} parent=55 // loop_header_branch
              %266 = sbr.rel (%p264) target = $region63
            $region60: #{tpu_custom_call.1} parent=55 // loop_body
              %v270 = vld [vmem:[%s268] sm:$0xff]
              %271 = vst [vmem:[%s269] sm:$0xff] %v270
            $region61: #{tpu_custom_call.1} parent=55 // loop_footer
              %s267 = sadd.s32 1, %s263
            $region62: #{tpu_custom_call.1} parent=55 // loop_footer_branch
              %262 = sbr.rel target = $region58
            $region63: #{tpu_custom_call.1} parent=55 // loop_exit
              _
          $region56: #{tpu_custom_call.1} parent=40 // pred_fallthru
            _
          // Predicated region
          $region64: #{tpu_custom_call.1} parent=40 // pred_check
            _
          $region65: #{tpu_custom_call.1} parent=40 // pred_check_branch
            %273 = sbr.rel target = $region67
          $region66: #{tpu_custom_call.1} parent=40 // pred_region
            _
          $region67: #{tpu_custom_call.1} parent=40 // pred_fallthru
            _
        $region41: #{tpu_custom_call.1} parent=36 // pred_fallthru
          _
        // Predicated region
        $region42: #{tpu_custom_call.1} parent=36 // pred_check
          _
        $region43: #{tpu_custom_call.1} parent=36 // pred_check_branch
          %247 = sbr.rel target = $region45
        $region44: #{tpu_custom_call.1} parent=36 // pred_region
          %s249 = ssub.s32 256, 1
          loop: start=0, step=1, limit=1
          $region46: #{tpu_custom_call.1} parent=44 // loop_pre_header
            _
          $region47: #{tpu_custom_call.1} parent=44 // loop_header
            %s251 = sphi 0, %s255
            %p252 = scmp.ge.s32.totalorder %s251, 1
            %s256 = sphi [#allocation3], [#allocation3]
            %s257 = sphi %s7, %s7
          $region48: #{tpu_custom_call.1} parent=44 // loop_header_branch
            %254 = sbr.rel (%p252) target = $region52
          $region49: #{tpu_custom_call.1} parent=44 // loop_body
            %v258 = vld [vmem:[%s256] sm:%s249]
            %259 = vst [vmem:[%s257] sm:%s249] %v258
          $region50: #{tpu_custom_call.1} parent=44 // loop_footer
            %s255 = sadd.s32 1, %s251
          $region51: #{tpu_custom_call.1} parent=44 // loop_footer_branch
            %250 = sbr.rel target = $region47
          $region52: #{tpu_custom_call.1} parent=44 // loop_exit
            _
        $region45: #{tpu_custom_call.1} parent=36 // pred_fallthru
          _
      $region37: #{tpu_custom_call.1} parent=32 // pred_fallthru
        _
      %274 = vnop
    $region33: #{tpu_custom_call.1} parent=1 // pred_fallthru
      _
    // Predicated region
    $region68: #{tpu_custom_call.1} parent=1 // pred_check
      _
    $region69: #{tpu_custom_call.1} parent=1 // pred_check_branch
      %276 = sbr.rel (0) target = $region71
    $region70: #{tpu_custom_call.1} parent=1 // pred_region
      _
    $region71: #{tpu_custom_call.1} parent=1 // pred_fallthru
      _

</llo_original>
